<compile_context>
chip_gen: v6e
topology: v6e:2x2x1
jax: 0.10.0
libtpu: 0.0.40
codegen_flags: <defaults>
</compile_context>

<pallas_src>
import numpy as np
import jax
import jax.numpy as jnp
from jax.experimental import pallas as pl
from jax.experimental.pallas import tpu as pltpu


def _round_up(x, m):
    return ((x + m - 1) // m) * m


def _make_vote_kernel(max_translate_range):
    if max_translate_range is not None:
        lim_vals = tuple(
            float(v) for v in np.asarray(max_translate_range, np.float32).reshape(3))
    else:
        lim_vals = None

    def kernel(xyz_ref, feat_ref, w1_ref, shift_ref, w2_ref, b2_ref,
               vote_ref, off_ref):
        # feat_ref: (Cin, TN) channels-first tile; N is the (dense) lane axis.
        f = feat_ref[...].astype(jnp.float32)

        # mlp_modules: Conv1d(Cin->Cmid, k=1, no bias) with BN scale folded
        # into w1, BN shift as bias, then ReLU.
        h = jnp.dot(w1_ref[...], f, preferred_element_type=jnp.float32)    # (Cmid, TN)
        h = jnp.maximum(h + shift_ref[...], 0.0)

        # ctr_reg: Conv1d(Cmid->3, k=1, bias=True)
        o = jnp.dot(w2_ref[...], h, preferred_element_type=jnp.float32)    # (3, TN)
        o = o + b2_ref[...]

        if lim_vals is not None:
            # Static per-row clamp limit from scalar constants (no extra input DMA).
            row = jax.lax.broadcasted_iota(jnp.int32, o.shape, 0)          # (3, TN)
            lim = jnp.where(row == 0, lim_vals[0],
                            jnp.where(row == 1, lim_vals[1],
                                      lim_vals[2])).astype(jnp.float32)
            o_lim = jnp.where(o > lim, lim, o)
            o_lim = jnp.where(o_lim < -lim, -lim, o_lim)
        else:
            o_lim = o

        vote_ref[...] = (xyz_ref[...].astype(jnp.float32) + o_lim).astype(vote_ref.dtype)
        off_ref[...] = o.astype(off_ref.dtype)   # torch returns the UNclamped offsets

    return kernel


def vote_layer_forward(xyz, features, params, max_translate_range, *, tile_n=1024):
    """xyz: (B, N, 3) float32; features: (B, Cin, N) float32 (torch NCW layout)."""
    B, N, _ = xyz.shape
    Cin = features.shape[1]
    Cmid = params["w1"].shape[1]
    eps = 1e-5

    # Fold eval-mode BatchNorm into the first conv weight / bias.
    scale = params["bn_gamma"] / jnp.sqrt(params["bn_var"] + eps)          # (Cmid,)
    shift = params["bn_beta"] - params["bn_mean"] * scale                  # (Cmid,)
    w1_cf = (params["w1"] * scale[None, :]).T.astype(jnp.float32)          # (Cmid, Cin)
    shift_cf = shift.reshape(Cmid, 1).astype(jnp.float32)                  # (Cmid, 1)
    w2_cf = params["w2"].T.astype(jnp.float32)                             # (3, Cmid)
    b2_cf = params["b2"].reshape(3, 1).astype(jnp.float32)                 # (3, 1)

    # Channels-first point data; N is the lane axis everywhere. Features are
    # already NCW -> no transpose of the big array; xyz transpose is tiny.
    xyz_cf = jnp.transpose(xyz, (0, 2, 1))                                 # (B, 3, N)
    feats_cf = features                                                    # (B, Cin, N)

    # Lane-align / tile N.
    tile_n = _round_up(tile_n, 128)
    tn = min(tile_n, _round_up(N, 128))
    n_pad = _round_up(N, tn)
    if n_pad != N:
        feats_cf = jnp.pad(feats_cf, ((0, 0), (0, 0), (0, n_pad - N)))
        xyz_cf = jnp.pad(xyz_cf, ((0, 0), (0, 0), (0, n_pad - N)))

    grid = (B, n_pad // tn)
    kernel = _make_vote_kernel(max_translate_range)

    vote_cf, off_cf = pl.pallas_call(
        kernel,
        out_shape=(jax.ShapeDtypeStruct((B, 3, n_pad), xyz.dtype),
                   jax.ShapeDtypeStruct((B, 3, n_pad), xyz.dtype)),
        grid_spec=pltpu.PrefetchScalarGridSpec(
            num_scalar_prefetch=0,
            grid=grid,
            in_specs=[
                pl.BlockSpec((None, 3, tn), lambda b, n: (b, 0, n)),       # xyz (cf)
                pl.BlockSpec((None, Cin, tn), lambda b, n: (b, 0, n)),     # features (cf)
                pl.BlockSpec((Cmid, Cin), lambda b, n: (0, 0)),            # w1 (BN-folded)
                pl.BlockSpec((Cmid, 1), lambda b, n: (0, 0)),              # BN shift
                pl.BlockSpec((3, Cmid), lambda b, n: (0, 0)),              # w2
                pl.BlockSpec((3, 1), lambda b, n: (0, 0)),                 # b2
            ],
            out_specs=[
                pl.BlockSpec((None, 3, tn), lambda b, n: (b, 0, n)),       # vote_xyz (cf)
                pl.BlockSpec((None, 3, tn), lambda b, n: (b, 0, n)),       # ctr_offsets (cf)
            ],
        ),
        compiler_params=pltpu.CompilerParams(
            dimension_semantics=("parallel", "parallel")),
    )(xyz_cf, feats_cf, w1_cf, shift_cf, w2_cf, b2_cf)

    # Small (3-wide) transposes back to the torch return layout (B, N, 3).
    vote_xyz = jnp.transpose(vote_cf[:, :, :N], (0, 2, 1))
    ctr_offsets = jnp.transpose(off_cf[:, :, :N], (0, 2, 1))

    # In torch: feat_offets = ctr_offsets[..., 3:] -> empty tensor (B, N, 0)
    new_features = jnp.zeros((B, N, 0), dtype=xyz.dtype)
    return vote_xyz, new_features, xyz, ctr_offsets


def _reference(xyz, features, params, max_translate_range):
    """Pure-JAX reference mirroring the torch forward (eval-mode BN)."""
    eps = 1e-5
    f = jnp.transpose(features, (0, 2, 1))
    h = jnp.einsum("bnc,cm->bnm", f, params["w1"])
    scale = params["bn_gamma"] / jnp.sqrt(params["bn_var"] + eps)
    shift = params["bn_beta"] - params["bn_mean"] * scale
    h = jnp.maximum(h * scale + shift, 0.0)
    o = jnp.einsum("bnm,mk->bnk", h, params["w2"]) + params["b2"]
    lim = jnp.asarray(max_translate_range, jnp.float32).reshape(1, 1, 3)
    ol = jnp.where(o > lim, lim, o)
    ol = jnp.where(ol < -lim, -lim, ol)
    return xyz + ol, o


if __name__ == "__main__":
    # Module config: mlp_list=[Cmid], pre_channel=Cin, max_translate_range
    B, N, Cin, Cmid = 2, 128, 16, 32
    max_translate_range = [3.0, 3.0, 2.0]

    key = jax.random.PRNGKey(0)
    k_xyz, k_feat, k_w1, k_g, k_b, k_m, k_v, k_w2, k_b2 = jax.random.split(key, 9)

    xyz = jax.random.normal(k_xyz, (B, N, 3), dtype=jnp.float32)
    features = jax.random.normal(k_feat, (B, Cin, N), dtype=jnp.float32)

    params = {
        "w1": 0.2 * jax.random.normal(k_w1, (Cin, Cmid), dtype=jnp.float32),
        "bn_gamma": 1.0 + 0.1 * jax.random.normal(k_g, (Cmid,), dtype=jnp.float32),
        "bn_beta": 0.1 * jax.random.normal(k_b, (Cmid,), dtype=jnp.float32),
        "bn_mean": 0.1 * jax.random.normal(k_m, (Cmid,), dtype=jnp.float32),
        "bn_var": jnp.abs(jax.random.normal(k_v, (Cmid,), dtype=jnp.float32)) + 0.5,
        "w2": 0.5 * jax.random.normal(k_w2, (Cmid, 3), dtype=jnp.float32),
        "b2": 0.1 * jax.random.normal(k_b2, (3,), dtype=jnp.float32),
    }

    vote_xyz, new_features, xyz_select, ctr_offsets = jax.block_until_ready(
        vote_layer_forward(xyz, features, params, max_translate_range))

    ref_vote, ref_off = _reference(xyz, features, params, max_translate_range)

    assert vote_xyz.shape == (B, N, 3)
    assert new_features.shape == (B, N, 0)
    assert xyz_select.shape == (B, N, 3)
    assert ctr_offsets.shape == (B, N, 3)
    assert jnp.allclose(vote_xyz, ref_vote, atol=1e-4, rtol=1e-4)
    assert jnp.allclose(ctr_offsets, ref_off, atol=1e-4, rtol=1e-4)
    assert jnp.array_equal(xyz_select, xyz)

    print("KERNEL_OK")
</pallas_src>

<mosaic_0001>
module attributes {stable_mosaic.version = 11 : i64} {
  func.func @kernel(%arg0: i32, %arg1: i32, %arg2: memref<1x3x128xf32, #tpu.memory_space<vmem>>, %arg3: memref<1x16x128xf32, #tpu.memory_space<vmem>>, %arg4: memref<32x16xf32, #tpu.memory_space<vmem>>, %arg5: memref<32x1xf32, #tpu.memory_space<vmem>>, %arg6: memref<3x32xf32, #tpu.memory_space<vmem>>, %arg7: memref<3x1xf32, #tpu.memory_space<vmem>>, %arg8: memref<1x3x128xf32, #tpu.memory_space<vmem>>, %arg9: memref<1x3x128xf32, #tpu.memory_space<vmem>>) attributes {dimension_semantics = [#tpu.dimension_semantics<parallel>, #tpu.dimension_semantics<parallel>], iteration_bounds = array<i64: 2, 1>, scalar_prefetch = 0 : i64, scratch_operands = 0 : i64, tpu.core_type = #tpu.core_type<tc>, window_params = [{transform_indices = @transform_0, window_bounds = array<i64: 1, 3, 128>}, {transform_indices = @transform_1, window_bounds = array<i64: 1, 16, 128>}, {pipeline_mode = #tpu.pipeline_mode<synchronous>, transform_indices = @transform_2, window_bounds = array<i64: 32, 16>}, {pipeline_mode = #tpu.pipeline_mode<synchronous>, transform_indices = @transform_3, window_bounds = array<i64: 32, 1>}, {pipeline_mode = #tpu.pipeline_mode<synchronous>, transform_indices = @transform_4, window_bounds = array<i64: 3, 32>}, {pipeline_mode = #tpu.pipeline_mode<synchronous>, transform_indices = @transform_5, window_bounds = array<i64: 3, 1>}, {transform_indices = @transform_6, window_bounds = array<i64: 1, 3, 128>}, {transform_indices = @transform_7, window_bounds = array<i64: 1, 3, 128>}]} {
    %c0 = arith.constant 0 : index
    %c0_0 = arith.constant 0 : index
    %c0_1 = arith.constant 0 : index
    %0 = vector.load %arg3[%c0, %c0_0, %c0_1] : memref<1x16x128xf32, #tpu.memory_space<vmem>>, vector<1x16x128xf32>
    %1 = vector.shape_cast %0 : vector<1x16x128xf32> to vector<16x128xf32>
    %c0_2 = arith.constant 0 : index
    %c0_3 = arith.constant 0 : index
    %2 = vector.load %arg4[%c0_2, %c0_3] : memref<32x16xf32, #tpu.memory_space<vmem>>, vector<32x16xf32>
    %cst = arith.constant dense<0.000000e+00> : vector<32x128xf32>
    %3 = tpu.matmul %2, %1, %cst {dimension_numbers = #tpu.dot_dimension_numbers<[1], [0], [0], [1], [0, 0, 1, 1], [], []>} : vector<32x16xf32>, vector<16x128xf32>, vector<32x128xf32> -> vector<32x128xf32>
    %c0_4 = arith.constant 0 : index
    %c0_5 = arith.constant 0 : index
    %4 = vector.load %arg5[%c0_4, %c0_5] : memref<32x1xf32, #tpu.memory_space<vmem>>, vector<32x1xf32>
    %5 = vector.broadcast %4 : vector<32x1xf32> to vector<32x128xf32>
    %6 = arith.addf %3, %5 : vector<32x128xf32>
    %cst_6 = arith.constant 0.000000e+00 : f32
    %7 = vector.broadcast %cst_6 : f32 to vector<32x128xf32>
    %8 = arith.maximumf %6, %7 : vector<32x128xf32>
    %c0_7 = arith.constant 0 : index
    %c0_8 = arith.constant 0 : index
    %9 = vector.load %arg6[%c0_7, %c0_8] : memref<3x32xf32, #tpu.memory_space<vmem>>, vector<3x32xf32>
    %cst_9 = arith.constant dense<0.000000e+00> : vector<3x128xf32>
    %10 = tpu.matmul %9, %8, %cst_9 {dimension_numbers = #tpu.dot_dimension_numbers<[1], [0], [0], [1], [0, 0, 1, 1], [], []>} : vector<3x32xf32>, vector<32x128xf32>, vector<3x128xf32> -> vector<3x128xf32>
    %c0_10 = arith.constant 0 : index
    %c0_11 = arith.constant 0 : index
    %11 = vector.load %arg7[%c0_10, %c0_11] : memref<3x1xf32, #tpu.memory_space<vmem>>, vector<3x1xf32>
    %12 = vector.broadcast %11 : vector<3x1xf32> to vector<3x128xf32>
    %13 = arith.addf %10, %12 : vector<3x128xf32>
    %14 = tpu.iota {dimensions = array<i32: 0>} : vector<3x128xi32>
    %c0_i32 = arith.constant 0 : i32
    %15 = vector.broadcast %c0_i32 : i32 to vector<3x128xi32>
    %16 = arith.cmpi eq, %14, %15 : vector<3x128xi32>
    %c1_i32 = arith.constant 1 : i32
    %17 = vector.broadcast %c1_i32 : i32 to vector<3x128xi32>
    %18 = arith.cmpi eq, %14, %17 : vector<3x128xi32>
    %cst_12 = arith.constant 3.000000e+00 : f32
    %cst_13 = arith.constant 2.000000e+00 : f32
    %19 = vector.broadcast %cst_12 : f32 to vector<3x128xf32>
    %20 = vector.broadcast %cst_13 : f32 to vector<3x128xf32>
    %21 = arith.select %18, %19, %20 : vector<3x128xi1>, vector<3x128xf32>
    %cst_14 = arith.constant 3.000000e+00 : f32
    %22 = vector.broadcast %cst_14 : f32 to vector<3x128xf32>
    %23 = arith.select %16, %22, %21 : vector<3x128xi1>, vector<3x128xf32>
    %24 = arith.cmpf ogt, %13, %23 : vector<3x128xf32>
    %25 = arith.select %24, %23, %13 : vector<3x128xi1>, vector<3x128xf32>
    %cst_15 = arith.constant 0.000000e+00 : f32
    %26 = vector.broadcast %cst_15 : f32 to vector<3x128xf32>
    %27 = arith.subf %26, %23 : vector<3x128xf32>
    %28 = arith.cmpf olt, %25, %27 : vector<3x128xf32>
    %cst_16 = arith.constant 0.000000e+00 : f32
    %29 = vector.broadcast %cst_16 : f32 to vector<3x128xf32>
    %30 = arith.subf %29, %23 : vector<3x128xf32>
    %31 = arith.select %28, %30, %25 : vector<3x128xi1>, vector<3x128xf32>
    %c0_17 = arith.constant 0 : index
    %c0_18 = arith.constant 0 : index
    %c0_19 = arith.constant 0 : index
    %32 = vector.load %arg2[%c0_17, %c0_18, %c0_19] : memref<1x3x128xf32, #tpu.memory_space<vmem>>, vector<1x3x128xf32>
    %33 = vector.shape_cast %32 : vector<1x3x128xf32> to vector<3x128xf32>
    %34 = arith.addf %33, %31 : vector<3x128xf32>
    %c0_20 = arith.constant 0 : index
    %c0_21 = arith.constant 0 : index
    %c0_22 = arith.constant 0 : index
    %35 = vector.load %arg8[%c0_20, %c0_21, %c0_22] : memref<1x3x128xf32, #tpu.memory_space<vmem>>, vector<1x3x128xf32>
    %36 = vector.shape_cast %35 : vector<1x3x128xf32> to vector<3x128xf32>
    %37 = vector.shape_cast %34 : vector<3x128xf32> to vector<1x3x128xf32>
    tpu.vector_store %arg8[%c0_20, %c0_21, %c0_22], %37 {strides = array<i32>} : memref<1x3x128xf32, #tpu.memory_space<vmem>>, vector<1x3x128xf32>,
    %c0_23 = arith.constant 0 : index
    %c0_24 = arith.constant 0 : index
    %c0_25 = arith.constant 0 : index
    %38 = vector.load %arg9[%c0_23, %c0_24, %c0_25] : memref<1x3x128xf32, #tpu.memory_space<vmem>>, vector<1x3x128xf32>
    %39 = vector.shape_cast %38 : vector<1x3x128xf32> to vector<3x128xf32>
    %40 = vector.shape_cast %13 : vector<3x128xf32> to vector<1x3x128xf32>
    tpu.vector_store %arg9[%c0_23, %c0_24, %c0_25], %40 {strides = array<i32>} : memref<1x3x128xf32, #tpu.memory_space<vmem>>, vector<1x3x128xf32>,
    return
  }
  func.func @transform_0(%arg0: i32, %arg1: i32) -> (i32, i32, i32) {
    %c0_i32 = arith.constant 0 : i32
    %c0_i32_0 = arith.constant 0 : i32
    return %arg0, %c0_i32, %arg1 : i32, i32, i32
  }
  func.func @transform_1(%arg0: i32, %arg1: i32) -> (i32, i32, i32) {
    %c0_i32 = arith.constant 0 : i32
    %c0_i32_0 = arith.constant 0 : i32
    return %arg0, %c0_i32, %arg1 : i32, i32, i32
  }
  func.func @transform_2(%arg0: i32, %arg1: i32) -> (i32, i32) {
    %c0_i32 = arith.constant 0 : i32
    %c0_i32_0 = arith.constant 0 : i32
    %c0_i32_1 = arith.constant 0 : i32
    return %c0_i32, %c0_i32_0 : i32, i32
  }
  func.func @transform_3(%arg0: i32, %arg1: i32) -> (i32, i32) {
    %c0_i32 = arith.constant 0 : i32
    %c0_i32_0 = arith.constant 0 : i32
    %c0_i32_1 = arith.constant 0 : i32
    return %c0_i32, %c0_i32_0 : i32, i32
  }
  func.func @transform_4(%arg0: i32, %arg1: i32) -> (i32, i32) {
    %c0_i32 = arith.constant 0 : i32
    %c0_i32_0 = arith.constant 0 : i32
    %c0_i32_1 = arith.constant 0 : i32
    return %c0_i32, %c0_i32_0 : i32, i32
  }
  func.func @transform_5(%arg0: i32, %arg1: i32) -> (i32, i32) {
    %c0_i32 = arith.constant 0 : i32
    %c0_i32_0 = arith.constant 0 : i32
    %c0_i32_1 = arith.constant 0 : i32
    return %c0_i32, %c0_i32_0 : i32, i32
  }
  func.func @transform_6(%arg0: i32, %arg1: i32) -> (i32, i32, i32) {
    %c0_i32 = arith.constant 0 : i32
    %c0_i32_0 = arith.constant 0 : i32
    return %arg0, %c0_i32, %arg1 : i32, i32, i32
  }
  func.func @transform_7(%arg0: i32, %arg1: i32) -> (i32, i32, i32) {
    %c0_i32 = arith.constant 0 : i32
    %c0_i32_0 = arith.constant 0 : i32
    return %arg0, %c0_i32, %arg1 : i32, i32, i32
  }
}

</mosaic_0001>

<llo_original>
// kernel: tpu_custom_call.1
$region0: #{tpu_custom_call.1}
  #allocation0 [shape = 'u32[]', space=smem, size = 0x4, offset = 0x4, fixed_abs, tag = 'smem constant byte address 0x4 - core index']
  #allocation1 [shape = 'u32[144,128]{1,0:T(1,128)}', space=vmem, size = 0x12000, scoped, tag = 'internal scratch']
  %s0 = inlined_call_operand.vmem [shape: f32[2,3,128], index: 0, kind: input, shape index: {}]
  %s1 = inlined_call_operand.vmem [shape: f32[2,16,128], index: 1, kind: input, shape index: {}]
  %s2 = inlined_call_operand.vmem [shape: f32[32,16], index: 2, kind: input, shape index: {}]
  %s3 = inlined_call_operand.vmem [shape: f32[32,1], index: 3, kind: input, shape index: {}]
  %s4 = inlined_call_operand.vmem [shape: f32[3,32], index: 4, kind: input, shape index: {}]
  %s5 = inlined_call_operand.vmem [shape: f32[3,1], index: 5, kind: input, shape index: {}]
  %s6 = inlined_call_operand.vmem [shape: f32[2,3,128], index: 6, kind: output, shape index: {0}]
  %s7 = inlined_call_operand.vmem [shape: f32[2,3,128], index: 7, kind: output, shape index: {1}]
  %8 = xla_tuple %s6, %s7
  %s9 = sld [smem:[#allocation0]]
  $region65: #{tpu_custom_call.1} parent=0
    _
  %s11 = ssub.s32 1, %s9
  %s12 = scalar_select 0, %s11, %s9
  loop: start=0, step=1, limit=4
  $region2: #{tpu_custom_call.1} parent=0 // loop_pre_header
    _
  $region3: #{tpu_custom_call.1} parent=0 // loop_header
    %s14 = sphi 0, %s18
    %p15 = scmp.ge.s32.totalorder %s14, 4
    %s21 = sphi 0, %s33
    %s22 = sphi 0, %s29
    %s23 = sphi 0, %s21
    %s24 = sphi 0, %s22
    %s25 = sphi 0, %s23
    %s26 = sphi 0, %s24
    %s38 = sphi 0, %s40
    %s41 = sphi 0, %s38
    %s42 = sphi 0, %s41
    %s58 = sphi 0, %s42
    %s66 = sphi 0, %s68
    %s69 = sphi 0, %s66
    %s70 = sphi 0, %s69
    %s86 = sphi 0, %s70
    %s90 = sphi 0, %s90
    %s92 = sphi 0, %s90
    %s93 = sphi 0, %s92
    %s107 = sphi 0, %s93
    %s111 = sphi 0, %s111
    %s113 = sphi 0, %s111
    %s114 = sphi 0, %s113
    %s128 = sphi 0, %s114
    %s132 = sphi 0, %s132
    %s134 = sphi 0, %s132
    %s135 = sphi 0, %s134
    %s149 = sphi 0, %s135
    %s153 = sphi 0, %s153
    %s155 = sphi 0, %s153
    %s156 = sphi 0, %s155
    %s170 = sphi 0, %s156
    %s178 = sphi 0, %s180
    %s181 = sphi 0, %s178
    %s182 = sphi 0, %s181
    %s198 = sphi 0, %s182
    %s206 = sphi 0, %s208
    %s209 = sphi 0, %s206
    %s210 = sphi 0, %s209
    %s226 = sphi 0, %s210
  $region4: #{tpu_custom_call.1} parent=0 // loop_header_branch
    %17 = sbr.rel (%p15) target = $region8
  $region5: #{tpu_custom_call.1} parent=0 // loop_body
    %s19 = ssub.s32 %s14, 1
    %s20 = ssub.s32 %s14, 2
    %s27 = sadd.s32 1, %s22
    %p28 = scmp.ge.s32.totalorder %s27, 1
    %s29 = scalar_select %p28, 0, %s27
    %s30 = sadd.s32 1, %s21
    %s31 = scalar_select %p28, %s30, %s21
    %p32 = scmp.ge.s32.totalorder %s31, 2
    %s33 = scalar_select %p32, 0, %s31
    %s34 = ssub.s32 %s21, %s33
    %s35 = ssub.s32 %s22, %s29
    %s36 = sor.u32 %s34, %s35
    %p37 = scmp.eq.s32.totalorder %s36, 0
    %s39 = sadd.s32 %s38, 1
    %s40 = scalar_select %p37, %s38, %s39
    %p43 = pneg %p37
    %p44 = scmp.eq.s32.totalorder %s14, 1
    %p45 = por %p43, %p44
    %p46 = scmp.ne.s32.totalorder %s38, %s41
    %p47 = scmp.eq.s32.totalorder %s14, 0
    %p48 = por %p46, %p47
    %p49 = scmp.ne.s32.totalorder %s38, %s41
    %p50 = scmp.eq.s32.totalorder %s19, 1
    %p51 = por %p49, %p50
    %p52 = scmp.ne.s32.totalorder %s41, %s42
    %p53 = scmp.eq.s32.totalorder %s19, 0
    %p54 = por %p52, %p53
    %p55 = scmp.ne.s32.totalorder %s41, %s42
    %p56 = scmp.eq.s32.totalorder %s20, 1
    %p57 = por %p55, %p56
    %p59 = scmp.ne.s32.totalorder %s42, %s58
    %p60 = scmp.eq.s32.totalorder %s20, 0
    %p61 = por %p59, %p60
    %s62 = ssub.s32 %s21, %s33
    %s63 = ssub.s32 %s22, %s29
    %s64 = sor.u32 %s62, %s63
    %p65 = scmp.eq.s32.totalorder %s64, 0
    %s67 = sadd.s32 %s66, 1
    %s68 = scalar_select %p65, %s66, %s67
    %p71 = pneg %p65
    %p72 = scmp.eq.s32.totalorder %s14, 1
    %p73 = por %p71, %p72
    %p74 = scmp.ne.s32.totalorder %s66, %s69
    %p75 = scmp.eq.s32.totalorder %s14, 0
    %p76 = por %p74, %p75
    %p77 = scmp.ne.s32.totalorder %s66, %s69
    %p78 = scmp.eq.s32.totalorder %s19, 1
    %p79 = por %p77, %p78
    %p80 = scmp.ne.s32.totalorder %s69, %s70
    %p81 = scmp.eq.s32.totalorder %s19, 0
    %p82 = por %p80, %p81
    %p83 = scmp.ne.s32.totalorder %s69, %s70
    %p84 = scmp.eq.s32.totalorder %s20, 1
    %p85 = por %p83, %p84
    %p87 = scmp.ne.s32.totalorder %s70, %s86
    %p88 = scmp.eq.s32.totalorder %s20, 0
    %p89 = por %p87, %p88
    %s91 = sadd.s32 %s90, 1
    %p94 = scmp.eq.s32.totalorder %s14, 1
    %p95 = scmp.ne.s32.totalorder %s90, %s92
    %p96 = scmp.eq.s32.totalorder %s14, 0
    %p97 = por %p95, %p96
    %p98 = scmp.ne.s32.totalorder %s90, %s92
    %p99 = scmp.eq.s32.totalorder %s19, 1
    %p100 = por %p98, %p99
    %p101 = scmp.ne.s32.totalorder %s92, %s93
    %p102 = scmp.eq.s32.totalorder %s19, 0
    %p103 = por %p101, %p102
    %p104 = scmp.ne.s32.totalorder %s92, %s93
    %p105 = scmp.eq.s32.totalorder %s20, 1
    %p106 = por %p104, %p105
    %p108 = scmp.ne.s32.totalorder %s93, %s107
    %p109 = scmp.eq.s32.totalorder %s20, 0
    %p110 = por %p108, %p109
    %s112 = sadd.s32 %s111, 1
    %p115 = scmp.eq.s32.totalorder %s14, 1
    %p116 = scmp.ne.s32.totalorder %s111, %s113
    %p117 = scmp.eq.s32.totalorder %s14, 0
    %p118 = por %p116, %p117
    %p119 = scmp.ne.s32.totalorder %s111, %s113
    %p120 = scmp.eq.s32.totalorder %s19, 1
    %p121 = por %p119, %p120
    %p122 = scmp.ne.s32.totalorder %s113, %s114
    %p123 = scmp.eq.s32.totalorder %s19, 0
    %p124 = por %p122, %p123
    %p125 = scmp.ne.s32.totalorder %s113, %s114
    %p126 = scmp.eq.s32.totalorder %s20, 1
    %p127 = por %p125, %p126
    %p129 = scmp.ne.s32.totalorder %s114, %s128
    %p130 = scmp.eq.s32.totalorder %s20, 0
    %p131 = por %p129, %p130
    %s133 = sadd.s32 %s132, 1
    %p136 = scmp.eq.s32.totalorder %s14, 1
    %p137 = scmp.ne.s32.totalorder %s132, %s134
    %p138 = scmp.eq.s32.totalorder %s14, 0
    %p139 = por %p137, %p138
    %p140 = scmp.ne.s32.totalorder %s132, %s134
    %p141 = scmp.eq.s32.totalorder %s19, 1
    %p142 = por %p140, %p141
    %p143 = scmp.ne.s32.totalorder %s134, %s135
    %p144 = scmp.eq.s32.totalorder %s19, 0
    %p145 = por %p143, %p144
    %p146 = scmp.ne.s32.totalorder %s134, %s135
    %p147 = scmp.eq.s32.totalorder %s20, 1
    %p148 = por %p146, %p147
    %p150 = scmp.ne.s32.totalorder %s135, %s149
    %p151 = scmp.eq.s32.totalorder %s20, 0
    %p152 = por %p150, %p151
    %s154 = sadd.s32 %s153, 1
    %p157 = scmp.eq.s32.totalorder %s14, 1
    %p158 = scmp.ne.s32.totalorder %s153, %s155
    %p159 = scmp.eq.s32.totalorder %s14, 0
    %p160 = por %p158, %p159
    %p161 = scmp.ne.s32.totalorder %s153, %s155
    %p162 = scmp.eq.s32.totalorder %s19, 1
    %p163 = por %p161, %p162
    %p164 = scmp.ne.s32.totalorder %s155, %s156
    %p165 = scmp.eq.s32.totalorder %s19, 0
    %p166 = por %p164, %p165
    %p167 = scmp.ne.s32.totalorder %s155, %s156
    %p168 = scmp.eq.s32.totalorder %s20, 1
    %p169 = por %p167, %p168
    %p171 = scmp.ne.s32.totalorder %s156, %s170
    %p172 = scmp.eq.s32.totalorder %s20, 0
    %p173 = por %p171, %p172
    %s174 = ssub.s32 %s21, %s33
    %s175 = ssub.s32 %s22, %s29
    %s176 = sor.u32 %s174, %s175
    %p177 = scmp.eq.s32.totalorder %s176, 0
    %s179 = sadd.s32 %s178, 1
    %s180 = scalar_select %p177, %s178, %s179
    %p183 = pneg %p177
    %p184 = scmp.eq.s32.totalorder %s14, 1
    %p185 = por %p183, %p184
    %p186 = scmp.ne.s32.totalorder %s178, %s181
    %p187 = scmp.eq.s32.totalorder %s14, 0
    %p188 = por %p186, %p187
    %p189 = scmp.ne.s32.totalorder %s178, %s181
    %p190 = scmp.eq.s32.totalorder %s19, 1
    %p191 = por %p189, %p190
    %p192 = scmp.ne.s32.totalorder %s181, %s182
    %p193 = scmp.eq.s32.totalorder %s19, 0
    %p194 = por %p192, %p193
    %p195 = scmp.ne.s32.totalorder %s181, %s182
    %p196 = scmp.eq.s32.totalorder %s20, 1
    %p197 = por %p195, %p196
    %p199 = scmp.ne.s32.totalorder %s182, %s198
    %p200 = scmp.eq.s32.totalorder %s20, 0
    %p201 = por %p199, %p200
    %s202 = ssub.s32 %s21, %s33
    %s203 = ssub.s32 %s22, %s29
    %s204 = sor.u32 %s202, %s203
    %p205 = scmp.eq.s32.totalorder %s204, 0
    %s207 = sadd.s32 %s206, 1
    %s208 = scalar_select %p205, %s206, %s207
    %p211 = pneg %p205
    %p212 = scmp.eq.s32.totalorder %s14, 1
    %p213 = por %p211, %p212
    %p214 = scmp.ne.s32.totalorder %s206, %s209
    %p215 = scmp.eq.s32.totalorder %s14, 0
    %p216 = por %p214, %p215
    %p217 = scmp.ne.s32.totalorder %s206, %s209
    %p218 = scmp.eq.s32.totalorder %s19, 1
    %p219 = por %p217, %p218
    %p220 = scmp.ne.s32.totalorder %s209, %s210
    %p221 = scmp.eq.s32.totalorder %s19, 0
    %p222 = por %p220, %p221
    %p223 = scmp.ne.s32.totalorder %s209, %s210
    %p224 = scmp.eq.s32.totalorder %s20, 1
    %p225 = por %p223, %p224
    %p227 = scmp.ne.s32.totalorder %s210, %s226
    %p228 = scmp.eq.s32.totalorder %s20, 0
    %p229 = por %p227, %p228
    %p230 = scmp.le.s32.totalorder 1, %s14
    %p231 = scmp.lt.s32.totalorder %s14, 3
    %p232 = pnand %p230, %p231
    %p233 = pneg %p232
    // Predicated region
    $region9: #{tpu_custom_call.1} parent=5 // pred_check
      _
    $region10: #{tpu_custom_call.1} parent=5 // pred_check_branch
      %235 = sbr.rel (%p232) target = $region12
    $region11: #{tpu_custom_call.1} parent=5 // pred_region
      %s236 = ssub.s32 %s14, 1
      // Predicated region
      $region13: #{tpu_custom_call.1} parent=11 // pred_check
        %p237 = pneg %p103
      $region14: #{tpu_custom_call.1} parent=11 // pred_check_branch
        %239 = sbr.rel (%p237) target = $region16
      $region15: #{tpu_custom_call.1} parent=11 // pred_region
        _
      $region16: #{tpu_custom_call.1} parent=11 // pred_fallthru
        _
      // Predicated region
      $region17: #{tpu_custom_call.1} parent=11 // pred_check
        %p240 = pneg %p124
      $region18: #{tpu_custom_call.1} parent=11 // pred_check_branch
        %242 = sbr.rel (%p240) target = $region20
      $region19: #{tpu_custom_call.1} parent=11 // pred_region
        _
      $region20: #{tpu_custom_call.1} parent=11 // pred_fallthru
        _
      // Predicated region
      $region21: #{tpu_custom_call.1} parent=11 // pred_check
        %p243 = pneg %p145
      $region22: #{tpu_custom_call.1} parent=11 // pred_check_branch
        %245 = sbr.rel (%p243) target = $region24
      $region23: #{tpu_custom_call.1} parent=11 // pred_region
        _
      $region24: #{tpu_custom_call.1} parent=11 // pred_fallthru
        _
      // Predicated region
      $region25: #{tpu_custom_call.1} parent=11 // pred_check
        %p246 = pneg %p166
      $region26: #{tpu_custom_call.1} parent=11 // pred_check_branch
        %248 = sbr.rel (%p246) target = $region28
      $region27: #{tpu_custom_call.1} parent=11 // pred_region
        _
      $region28: #{tpu_custom_call.1} parent=11 // pred_fallthru
        _
    $region12: #{tpu_custom_call.1} parent=5 // pred_fallthru
      _
    %p249 = scmp.lt.s32.totalorder %s14, 2
    // Predicated region
    $region29: #{tpu_custom_call.1} parent=5 // pred_check
      %p250 = pneg %p249
    $region30: #{tpu_custom_call.1} parent=5 // pred_check_branch
      %252 = sbr.rel (%p250) target = $region32
    $region31: #{tpu_custom_call.1} parent=5 // pred_region
      // Predicated region
      $region33: #{tpu_custom_call.1} parent=31 // pred_check
        %p253 = pneg %p48
      $region34: #{tpu_custom_call.1} parent=31 // pred_check_branch
        %255 = sbr.rel (%p253) target = $region36
      $region35: #{tpu_custom_call.1} parent=31 // pred_region
        %p256 = scmp.lt.s32.totalorder %s21, 1
        %s257 = scalar_select %p256, %s21, 1
        %p258 = scmp.lt.s32.totalorder %s22, 0
        %s259 = scalar_select %p258, %s22, 0
        %s260 = sadd.s32 %s259, %s257
        %s261 = smul.addr %s260, 4
        %s262 = scalar_lea.vmem %s0, %s261
      $region36: #{tpu_custom_call.1} parent=31 // pred_fallthru
        _
      // Predicated region
      $region37: #{tpu_custom_call.1} parent=31 // pred_check
        %p263 = pneg %p76
      $region38: #{tpu_custom_call.1} parent=31 // pred_check_branch
        %265 = sbr.rel (%p263) target = $region40
      $region39: #{tpu_custom_call.1} parent=31 // pred_region
        %p266 = scmp.lt.s32.totalorder %s21, 1
        %s267 = scalar_select %p266, %s21, 1
        %p268 = scmp.lt.s32.totalorder %s22, 0
        %s269 = scalar_select %p268, %s22, 0
        %s270 = smul.addr %s267, 2
        %s271 = sadd.s32 %s269, %s270
        %s272 = smul.addr %s271, 8
        %s273 = scalar_lea.vmem %s1, %s272
      $region40: #{tpu_custom_call.1} parent=31 // pred_fallthru
        _
    $region32: #{tpu_custom_call.1} parent=5 // pred_fallthru
      _
    %p274 = scmp.le.s32.totalorder 1, %s14
    %p275 = scmp.lt.s32.totalorder %s14, 3
    %p276 = pnand %p274, %p275
    %p277 = pneg %p276
    // Predicated region
    $region41: #{tpu_custom_call.1} parent=5 // pred_check
      _
    $region42: #{tpu_custom_call.1} parent=5 // pred_check_branch
      %279 = sbr.rel (%p276) target = $region44
    $region43: #{tpu_custom_call.1} parent=5 // pred_region
      %s280 = ssub.s32 %s14, 1
      %p281 = scmp.lt.s32.totalorder %s23, 1
      %s282 = scalar_select %p281, %s23, 1
      %p283 = scmp.lt.s32.totalorder %s24, 0
      %s284 = scalar_select %p283, %s24, 0
      %s285 = sadd.s32 %s284, %s282
      %s286 = smul.addr %s285, 4
      %s287 = scalar_lea.vmem %s0, %s286
      %p288 = pneg %p54
      %p289 = pneg %p51
      %p290 = scmp.lt.s32.totalorder %s23, 1
      %s291 = scalar_select %p290, %s23, 1
      %p292 = scmp.lt.s32.totalorder %s24, 0
      %s293 = scalar_select %p292, %s24, 0
      %s294 = smul.addr %s291, 2
      %s295 = sadd.s32 %s293, %s294
      %s296 = smul.addr %s295, 8
      %s297 = scalar_lea.vmem %s1, %s296
      %p298 = pneg %p82
      %p299 = pneg %p79
      %p300 = pneg %p103
      %p301 = pneg %p100
      %p302 = pneg %p124
      %p303 = pneg %p121
      %p304 = pneg %p145
      %p305 = pneg %p142
      %p306 = pneg %p166
      %p307 = pneg %p163
      %p308 = pneg %p194
      %p309 = pneg %p191
      %p310 = scmp.lt.s32.totalorder %s23, 1
      %s311 = scalar_select %p310, %s23, 1
      %p312 = scmp.lt.s32.totalorder %s24, 0
      %s313 = scalar_select %p312, %s24, 0
      %s314 = sadd.s32 %s313, %s311
      %s315 = smul.addr %s314, 4
      %s316 = scalar_lea.vmem %s6, %s315
      %p317 = pneg %p222
      %p318 = pneg %p219
      %p319 = scmp.lt.s32.totalorder %s23, 1
      %s320 = scalar_select %p319, %s23, 1
      %p321 = scmp.lt.s32.totalorder %s24, 0
      %s322 = scalar_select %p321, %s24, 0
      %s323 = sadd.s32 %s322, %s320
      %s324 = smul.addr %s323, 4
      %s325 = scalar_lea.vmem %s7, %s324
      %p326 = scmp.lt.s32.totalorder %s23, 1
      %s327 = scalar_select %p326, %s23, 1
      %p328 = scmp.lt.s32.totalorder %s24, 0
      %s329 = scalar_select %p328, %s24, 0
      %s330 = sadd.s32 %s329, %s327
      %s331 = smul.addr %s330, 4
      %s332 = scalar_lea.vmem %s0, %s331
      %p333 = scmp.lt.s32.totalorder %s23, 1
      %s334 = scalar_select %p333, %s23, 1
      %p335 = scmp.lt.s32.totalorder %s24, 0
      %s336 = scalar_select %p335, %s24, 0
      %s337 = smul.addr %s334, 2
      %s338 = sadd.s32 %s336, %s337
      %s339 = smul.addr %s338, 8
      %s340 = scalar_lea.vmem %s1, %s339
      %p341 = scmp.lt.s32.totalorder %s23, 1
      %s342 = scalar_select %p341, %s23, 1
      %p343 = scmp.lt.s32.totalorder %s24, 0
      %s344 = scalar_select %p343, %s24, 0
      %s345 = sadd.s32 %s344, %s342
      %s346 = smul.addr %s345, 4
      %s347 = scalar_lea.vmem %s6, %s346
      %p348 = scmp.lt.s32.totalorder %s23, 1
      %s349 = scalar_select %p348, %s23, 1
      %p350 = scmp.lt.s32.totalorder %s24, 0
      %s351 = scalar_select %p350, %s24, 0
      %s352 = sadd.s32 %s351, %s349
      %s353 = smul.addr %s352, 4
      %s354 = scalar_lea.vmem %s7, %s353
      %v355 = vld [vmem:[%s340] sm:$0xff]
      %v356 = vld [vmem:[%s340 + $0x8] sm:$0xff]
      %v357 = vld [vmem:[%s2] sm:$0xff]
      %v358 = vld [vmem:[%s2 + $0x8] sm:$0xff]
      %v359 = vld [vmem:[%s2 + $0x10] sm:$0xff]
      %v360 = vld [vmem:[%s2 + $0x18] sm:$0xff]
      %v361 = vld [vmem:[%s3] sm:$0xff]
      %v362 = vld [vmem:[%s3 + $0x8] sm:$0xff]
      %v363 = vld [vmem:[%s3 + $0x10] sm:$0xff]
      %v364 = vld [vmem:[%s3 + $0x18] sm:$0xff]
      %366 = vset.pattern.permute.xlu0 0
      %367 = vperm.xlu0 %366, %v361
      %v368 = vpop.permute.xlu0 %367
      %371 = vset.pattern.permute.xlu0 0
      %372 = vperm.xlu0 %371, %v362
      %v373 = vpop.permute.xlu0 %372
      %376 = vset.pattern.permute.xlu0 0
      %377 = vperm.xlu0 %376, %v363
      %v378 = vpop.permute.xlu0 %377
      %381 = vset.pattern.permute.xlu0 0
      %382 = vperm.xlu0 %381, %v364
      %v383 = vpop.permute.xlu0 %382
      %vm385 = vcmask 130048
      %v387 = vsel %vm385, %v357, 0
      %v390 = vsel %vm385, %v358, 0
      %v393 = vsel %vm385, %v359, 0
      %v396 = vsel %vm385, %v360, 0
      %398 = vmatprep.subr.mxu0 0.0
      %399 = vmatpush1.msra.mxu0 0.0
      %400 = vmatprep.subr.mxu0 0.0
      %401 = vmatpush1.msra.mxu0 0.0
      %402 = vmatprep.subr.mxu0 0.0
      %403 = vmatpush1.msra.mxu0 0.0
      %404 = vmatprep.subr.mxu0 0.0
      %405 = vmatpush1.msra.mxu0 0.0
      %406 = vmatprep.subr.mxu0 0.0
      %407 = vmatpush1.msra.mxu0 0.0
      %408 = vmatprep.subr.mxu0 0.0
      %409 = vmatpush1.msra.mxu0 0.0
      %410 = vmatprep.subr.mxu0 0.0
      %411 = vmatpush1.msra.mxu0 0.0
      %412 = vmatprep.subr.mxu0 0.0
      %413 = vmatpush1.msra.mxu0 0.0
      %414 = vmatprep.subr.mxu0 0.0
      %415 = vmatpush1.msra.mxu0 0.0
      %416 = vmatprep.subr.mxu0 0.0
      %417 = vmatpush1.msra.mxu0 0.0
      %418 = vmatprep.subr.mxu0 0.0
      %419 = vmatpush1.msra.mxu0 0.0
      %420 = vmatprep.subr.mxu0 0.0
      %421 = vmatpush1.msra.mxu0 0.0
      %422 = vmatprep.subr.mxu0 0.0
      %423 = vmatpush1.msra.mxu0 0.0
      %424 = vmatprep.subr.mxu0 0.0
      %425 = vmatpush1.msra.mxu0 0.0
      %426 = vmatprep.subr.mxu0 0.0
      %427 = vmatpush1.msra.mxu0 %v356
      %428 = vmatprep.subr.mxu0 0.0
      %429 = vmatpush1.msra.mxu0 %v355
      %430 = vmatprep.subr.mxu0 0.0
      %431 = vmatpush2.msra.mxu0 0.0
      %432 = vmatprep.subr.mxu0 0.0
      %433 = vmatpush2.msra.mxu0 0.0
      %434 = vmatprep.subr.mxu0 0.0
      %435 = vmatpush2.msra.mxu0 0.0
      %436 = vmatprep.subr.mxu0 0.0
      %437 = vmatpush2.msra.mxu0 0.0
      %438 = vmatprep.subr.mxu0 0.0
      %439 = vmatpush2.msra.mxu0 0.0
      %440 = vmatprep.subr.mxu0 0.0
      %441 = vmatpush2.msra.mxu0 0.0
      %442 = vmatprep.subr.mxu0 0.0
      %443 = vmatpush2.msra.mxu0 0.0
      %444 = vmatprep.subr.mxu0 0.0
      %445 = vmatpush2.msra.mxu0 0.0
      %446 = vmatprep.subr.mxu0 0.0
      %447 = vmatpush2.msra.mxu0 0.0
      %448 = vmatprep.subr.mxu0 0.0
      %449 = vmatpush2.msra.mxu0 0.0
      %450 = vmatprep.subr.mxu0 0.0
      %451 = vmatpush2.msra.mxu0 0.0
      %452 = vmatprep.subr.mxu0 0.0
      %453 = vmatpush2.msra.mxu0 0.0
      %454 = vmatprep.subr.mxu0 0.0
      %455 = vmatpush2.msra.mxu0 0.0
      %456 = vmatprep.subr.mxu0 0.0
      %457 = vmatpush2.msra.mxu0 0.0
      %458 = vmatprep.subr.mxu0 0.0
      %459 = vmatpush2.msra.mxu0 0.0
      %460 = vmatprep.subr.mxu0 0.0
      %461 = vmatpush2.msra.mxu0 0.0
      %462 = vmatprep.mubr.f32.mxu0 0.0
      %463 = vmatmul.mubr.f32.gmra.mxu0 %v387
      %v464 = vpop.f32.mrf.mxu0
      %v465 = vadd.f32 %v368, %v464
      %v466 = vpop.f32.mrf.mxu0
      %467 = vmatprep.mubr.f32.mxu0 0.0
      %468 = vmatmul.mubr.f32.gmra.mxu0 %v390
      %v469 = vpop.f32.mrf.mxu0
      %v470 = vadd.f32 %v373, %v469
      %v471 = vpop.f32.mrf.mxu0
      %472 = vmatprep.mubr.f32.mxu0 0.0
      %473 = vmatmul.mubr.f32.gmra.mxu0 %v393
      %v474 = vpop.f32.mrf.mxu0
      %v475 = vadd.f32 %v378, %v474
      %v476 = vpop.f32.mrf.mxu0
      %477 = vmatprep.mubr.f32.mxu0 0.0
      %478 = vmatmul.mubr.f32.gmra.mxu0 %v396
      %v479 = vpop.f32.mrf.mxu0
      %v480 = vadd.f32 %v383, %v479
      %v481 = vpop.f32.mrf.mxu0
      %482 = vdwg.mxu0
      %v483 = vmax.f32 %v465, 0.0
      %v484 = vmax.f32 %v470, 0.0
      %v485 = vmax.f32 %v475, 0.0
      %v486 = vmax.f32 %v480, 0.0
      %v487 = vld [vmem:[%s4] sm:$0x7]
      %v488 = vld [vmem:[%s5] sm:$0x7]
      %490 = vset.pattern.permute.xlu0 0
      %491 = vperm.xlu0 %490, %v488
      %v492 = vpop.permute.xlu0 %491
      %vm494 = vcmask 261120
      %v496 = vsel %vm494, %v487, 0
      %498 = vmatprep.subr.mxu0 0.0
      %499 = vmatpush1.msra.mxu0 0.0
      %500 = vmatprep.subr.mxu0 0.0
      %501 = vmatpush1.msra.mxu0 0.0
      %502 = vmatprep.subr.mxu0 0.0
      %503 = vmatpush1.msra.mxu0 0.0
      %504 = vmatprep.subr.mxu0 0.0
      %505 = vmatpush1.msra.mxu0 0.0
      %506 = vmatprep.subr.mxu0 0.0
      %507 = vmatpush1.msra.mxu0 0.0
      %508 = vmatprep.subr.mxu0 0.0
      %509 = vmatpush1.msra.mxu0 0.0
      %510 = vmatprep.subr.mxu0 0.0
      %511 = vmatpush1.msra.mxu0 0.0
      %512 = vmatprep.subr.mxu0 0.0
      %513 = vmatpush1.msra.mxu0 0.0
      %514 = vmatprep.subr.mxu0 0.0
      %515 = vmatpush1.msra.mxu0 0.0
      %516 = vmatprep.subr.mxu0 0.0
      %517 = vmatpush1.msra.mxu0 0.0
      %518 = vmatprep.subr.mxu0 0.0
      %519 = vmatpush1.msra.mxu0 0.0
      %520 = vmatprep.subr.mxu0 0.0
      %521 = vmatpush1.msra.mxu0 0.0
      %522 = vmatprep.subr.mxu0 0.0
      %523 = vmatpush1.msra.mxu0 %v486
      %524 = vmatprep.subr.mxu0 0.0
      %525 = vmatpush1.msra.mxu0 %v485
      %526 = vmatprep.subr.mxu0 0.0
      %527 = vmatpush1.msra.mxu0 %v484
      %528 = vmatprep.subr.mxu0 0.0
      %529 = vmatpush1.msra.mxu0 %v483
      %530 = vmatprep.subr.mxu0 0.0
      %531 = vmatpush2.msra.mxu0 0.0
      %532 = vmatprep.subr.mxu0 0.0
      %533 = vmatpush2.msra.mxu0 0.0
      %534 = vmatprep.subr.mxu0 0.0
      %535 = vmatpush2.msra.mxu0 0.0
      %536 = vmatprep.subr.mxu0 0.0
      %537 = vmatpush2.msra.mxu0 0.0
      %538 = vmatprep.subr.mxu0 0.0
      %539 = vmatpush2.msra.mxu0 0.0
      %540 = vmatprep.subr.mxu0 0.0
      %541 = vmatpush2.msra.mxu0 0.0
      %542 = vmatprep.subr.mxu0 0.0
      %543 = vmatpush2.msra.mxu0 0.0
      %544 = vmatprep.subr.mxu0 0.0
      %545 = vmatpush2.msra.mxu0 0.0
      %546 = vmatprep.subr.mxu0 0.0
      %547 = vmatpush2.msra.mxu0 0.0
      %548 = vmatprep.subr.mxu0 0.0
      %549 = vmatpush2.msra.mxu0 0.0
      %550 = vmatprep.subr.mxu0 0.0
      %551 = vmatpush2.msra.mxu0 0.0
      %552 = vmatprep.subr.mxu0 0.0
      %553 = vmatpush2.msra.mxu0 0.0
      %554 = vmatprep.subr.mxu0 0.0
      %555 = vmatpush2.msra.mxu0 0.0
      %556 = vmatprep.subr.mxu0 0.0
      %557 = vmatpush2.msra.mxu0 0.0
      %558 = vmatprep.subr.mxu0 0.0
      %559 = vmatpush2.msra.mxu0 0.0
      %560 = vmatprep.subr.mxu0 0.0
      %561 = vmatpush2.msra.mxu0 0.0
      %562 = vmatprep.mubr.f32.mxu0 0.0
      %563 = vmatmul.mubr.f32.gmra.mxu0 %v496
      %v564 = vpop.f32.mrf.mxu0
      %v565 = vadd.f32 %v492, %v564
      %v566 = vpop.f32.mrf.mxu0
      %567 = vdwg.mxu0
      %v568 = vlaneseq
      %v569 = vshrl.u32 %v568, 7
      %vm570 = vcmp.eq.s32.totalorder %v569, 0
      %vm571 = vcmp.eq.s32.totalorder %v569, 1
      %v572 = vsel %vm571, 3.0, 2.0
      %v573 = vsel %vm570, 3.0, %v572
      %vm574 = vcmp.gt.f32.partialorder %v565, %v573
      %v575 = vsel %vm574, %v573, %v565
      %v576 = vsub.f32 0.0, %v573
      %vm577 = vcmp.lt.f32.partialorder %v575, %v576
      %v578 = vsel %vm577, %v576, %v575
      %v579 = vld [vmem:[%s332] sm:$0x7]
      %v580 = vadd.f32 %v579, %v578
      %581 = vst [vmem:[%s347] sm:$0x7] %v580
      %582 = vst [vmem:[%s354] sm:$0x7] %v565
      %p583 = scmp.lt.s32.totalorder %s23, 1
      %s584 = scalar_select %p583, %s23, 1
      %p585 = scmp.lt.s32.totalorder %s24, 0
      %s586 = scalar_select %p585, %s24, 0
      %s587 = sadd.s32 %s586, %s584
      %s588 = smul.addr %s587, 4
      %s589 = scalar_lea.vmem %s6, %s588
      %p590 = scmp.lt.s32.totalorder %s23, 1
      %s591 = scalar_select %p590, %s23, 1
      %p592 = scmp.lt.s32.totalorder %s24, 0
      %s593 = scalar_select %p592, %s24, 0
      %s594 = sadd.s32 %s593, %s591
      %s595 = smul.addr %s594, 4
      %s596 = scalar_lea.vmem %s7, %s595
      // Predicated region
      $region45: #{tpu_custom_call.1} parent=43 // pred_check
        %p597 = pneg %p191
      $region46: #{tpu_custom_call.1} parent=43 // pred_check_branch
        %599 = sbr.rel (%p597) target = $region48
      $region47: #{tpu_custom_call.1} parent=43 // pred_region
        _
      $region48: #{tpu_custom_call.1} parent=43 // pred_fallthru
        _
      // Predicated region
      $region49: #{tpu_custom_call.1} parent=43 // pred_check
        %p600 = pneg %p219
      $region50: #{tpu_custom_call.1} parent=43 // pred_check_branch
        %602 = sbr.rel (%p600) target = $region52
      $region51: #{tpu_custom_call.1} parent=43 // pred_region
        _
      $region52: #{tpu_custom_call.1} parent=43 // pred_fallthru
        _
    $region44: #{tpu_custom_call.1} parent=5 // pred_fallthru
      _
    %p603 = scmp.le.s32.totalorder 2, %s14
    // Predicated region
    $region53: #{tpu_custom_call.1} parent=5 // pred_check
      %p604 = pneg %p603
    $region54: #{tpu_custom_call.1} parent=5 // pred_check_branch
      %606 = sbr.rel (%p604) target = $region56
    $region55: #{tpu_custom_call.1} parent=5 // pred_region
      %s607 = ssub.s32 %s14, 2
      // Predicated region
      $region57: #{tpu_custom_call.1} parent=55 // pred_check
        %p608 = pneg %p197
      $region58: #{tpu_custom_call.1} parent=55 // pred_check_branch
        %610 = sbr.rel (%p608) target = $region60
      $region59: #{tpu_custom_call.1} parent=55 // pred_region
        %p611 = scmp.lt.s32.totalorder %s25, 1
        %s612 = scalar_select %p611, %s25, 1
        %p613 = scmp.lt.s32.totalorder %s26, 0
        %s614 = scalar_select %p613, %s26, 0
        %s615 = sadd.s32 %s614, %s612
        %s616 = smul.addr %s615, 4
        %s617 = scalar_lea.vmem %s6, %s616
      $region60: #{tpu_custom_call.1} parent=55 // pred_fallthru
        _
      // Predicated region
      $region61: #{tpu_custom_call.1} parent=55 // pred_check
        %p618 = pneg %p225
      $region62: #{tpu_custom_call.1} parent=55 // pred_check_branch
        %620 = sbr.rel (%p618) target = $region64
      $region63: #{tpu_custom_call.1} parent=55 // pred_region
        %p621 = scmp.lt.s32.totalorder %s25, 1
        %s622 = scalar_select %p621, %s25, 1
        %p623 = scmp.lt.s32.totalorder %s26, 0
        %s624 = scalar_select %p623, %s26, 0
        %s625 = sadd.s32 %s624, %s622
        %s626 = smul.addr %s625, 4
        %s627 = scalar_lea.vmem %s7, %s626
      $region64: #{tpu_custom_call.1} parent=55 // pred_fallthru
        _
    $region56: #{tpu_custom_call.1} parent=5 // pred_fallthru
      _
  $region6: #{tpu_custom_call.1} parent=0 // loop_footer
    %s18 = sadd.s32 1, %s14
  $region7: #{tpu_custom_call.1} parent=0 // loop_footer_branch
    %13 = sbr.rel target = $region3
  $region8: #{tpu_custom_call.1} parent=0 // loop_exit
    _

</llo_original>
